<compile_context>
chip_gen: v5e
topology: v5e:2x2
jax: 0.10.0
libtpu: 0.0.40
codegen_flags: <defaults>
</compile_context>

<pallas_src>
import functools

import jax
import jax.numpy as jnp
from jax.experimental import pallas as pl
from jax.experimental.pallas import tpu as pltpu


# ---------------------------------------------------------------------------
# Kernel
# ---------------------------------------------------------------------------
def _dueling_dqn_kernel(x_ref,
                        w1_ref, b1_ref, w2_ref, b2_ref,
                        wh1_ref, bh1_ref, wh2_ref, bh2_ref,
                        q_ref, *, action_size):
    x = x_ref[...]

    # ---- feature layers (Linear + ReLU; Dropout is identity at inference) ----
    h = jnp.dot(x, w1_ref[...], preferred_element_type=jnp.float32) + b1_ref[...]
    h = jnp.maximum(h, 0.0)
    h = jnp.dot(h, w2_ref[...], preferred_element_type=jnp.float32) + b2_ref[...]
    h = jnp.maximum(h, 0.0)

    # ---- fused value||advantage hidden layer (one 64x64 matmul + ReLU) ----
    s = jnp.dot(h, wh1_ref[...], preferred_element_type=jnp.float32) + bh1_ref[...]
    s = jnp.maximum(s, 0.0)

    # ---- fused, combine-folded output layer: columns 0..A-1 ARE Q values ----
    # wh2 is lane-padded to 128 for the MXU; the dueling combine
    # Q = V + A - mean(A) was folded into wh2/bh2 on the host, so no epilogue.
    out = jnp.dot(s, wh2_ref[...], preferred_element_type=jnp.float32)   # [TB, 128]
    q_ref[...] = out[:, :action_size] + bh2_ref[...]                     # [TB, A]


# ---------------------------------------------------------------------------
# Wrapper
# ---------------------------------------------------------------------------
def _pick_batch_tile(batch):
    """Large tiles amortize per-grid-step overhead; keep >=2 steps on 2-TC chips."""
    cap = 1024
    two_core = False
    try:
        kind = jax.devices()[0].device_kind.lower()
        # v2..v6 generations have a single TensorCore per chip; newer (v7x) have 2.
        two_core = not any(v in kind for v in ("v2", "v3", "v4", "v5", "v6"))
    except Exception:
        pass
    if two_core and batch >= 16:
        tb = -(-batch // 2)                # cdiv(batch, 2): >=2 grid steps
        tb = ((tb + 7) // 8) * 8           # keep sublane-aligned block shape
        return min(tb, cap)
    return batch if batch <= cap else cap


def dueling_dqn_forward(x, fused, *, block_batch=None):
    """Full Dueling-DQN forward in one batch-gridded Pallas call -> [B, A] f32."""
    batch, state_size = x.shape
    action_size = fused["action_size"]
    tb = block_batch if block_batch is not None else _pick_batch_tile(batch)
    grid = (pl.cdiv(batch, tb),)

    weights = (fused["w1"], fused["b1"], fused["w2"], fused["b2"],
               fused["wh1"], fused["bh1"], fused["wh2"], fused["bh2"])

    def const_spec(arr):
        # Whole array, same block every grid step -> stays VMEM-resident.
        return pl.BlockSpec(arr.shape, lambda i: (0, 0))

    kernel = functools.partial(_dueling_dqn_kernel, action_size=action_size)

    # Advisory cost estimate so XLA schedules neighbors around the custom call.
    h0 = fused["w1"].shape[1]
    h1 = fused["w2"].shape[1]
    hh = fused["wh1"].shape[1]
    pc = fused["wh2"].shape[1]
    flops = 2 * batch * (state_size * h0 + h0 * h1 + h1 * hh + hh * pc)
    weight_bytes = sum(int(w.size) * w.dtype.itemsize for w in weights)
    bytes_accessed = batch * (x.dtype.itemsize * state_size + 4 * action_size) + weight_bytes
    cost = pl.CostEstimate(flops=flops, transcendentals=0, bytes_accessed=bytes_accessed)

    return pl.pallas_call(
        kernel,
        out_shape=jax.ShapeDtypeStruct((batch, action_size), jnp.float32),
        grid=grid,
        in_specs=[pl.BlockSpec((tb, state_size), lambda i: (i, 0))]
                 + [const_spec(w) for w in weights],
        out_specs=pl.BlockSpec((tb, action_size), lambda i: (i, 0)),
        compiler_params=pltpu.CompilerParams(
            dimension_semantics=("parallel",)),   # lets v7x's 2 TCs split the grid
        cost_estimate=cost,
    )(x, *weights)


# ---------------------------------------------------------------------------
# Parameters (xavier_uniform weights, zero biases -> matches _init_weights),
# stored (in_features, out_features) so x @ W == PyTorch's x @ W.T.
# ---------------------------------------------------------------------------
def xavier_uniform(key, fan_in, fan_out):
    limit = jnp.sqrt(6.0 / (fan_in + fan_out)).astype(jnp.float32)
    return jax.random.uniform(key, (fan_in, fan_out), jnp.float32, -limit, limit)


def make_params(key, state_size, action_size, hidden_units=(64, 64)):
    h0, h1 = hidden_units
    half = h1 // 2
    keys = jax.random.split(key, 6)
    return {
        "w1": xavier_uniform(keys[0], state_size, h0), "b1": jnp.zeros((1, h0), jnp.float32),
        "w2": xavier_uniform(keys[1], h0, h1),         "b2": jnp.zeros((1, h1), jnp.float32),
        "wv1": xavier_uniform(keys[2], h1, half),      "bv1": jnp.zeros((1, half), jnp.float32),
        "wv2": xavier_uniform(keys[3], half, 1),       "bv2": jnp.zeros((1, 1), jnp.float32),
        "wa1": xavier_uniform(keys[4], h1, half),      "ba1": jnp.zeros((1, half), jnp.float32),
        "wa2": xavier_uniform(keys[5], half, action_size),
        "ba2": jnp.zeros((1, action_size), jnp.float32),
    }


def fuse_head_params(p, action_size):
    """One-time host-side fusion: value||advantage hidden layer, and the dueling
    combine Q = V + A - mean(A) folded directly into the output weights/bias."""
    half = p["wv1"].shape[1]
    pad_cols = 128                                   # lane-dense head width for the MXU

    wh1 = jnp.concatenate([p["wv1"], p["wa1"]], axis=1)          # [h1, h1]
    bh1 = jnp.concatenate([p["bv1"], p["ba1"]], axis=1)          # [1, h1]

    # Q_j = s_v @ wv2 + s_a @ (wa2[:,j] - mean_k wa2[:,k]) + (bv2 + ba2_j - mean(ba2))
    wa2_centered = p["wa2"] - jnp.mean(p["wa2"], axis=1, keepdims=True)   # [half, A]
    ba2_centered = p["ba2"] - jnp.mean(p["ba2"], axis=1, keepdims=True)   # [1, A]

    wh2 = jnp.zeros((2 * half, pad_cols), jnp.float32)
    wh2 = wh2.at[:half, :action_size].set(
        jnp.broadcast_to(p["wv2"], (half, action_size)))          # value -> every Q column
    wh2 = wh2.at[half:, :action_size].set(wa2_centered)           # centered advantage head
    bh2 = p["bv2"] + ba2_centered                                 # [1, A]

    return {
        "w1": p["w1"], "b1": p["b1"],
        "w2": p["w2"], "b2": p["b2"],
        "wh1": wh1,    "bh1": bh1,
        "wh2": wh2,    "bh2": bh2,
        "action_size": action_size,
    }


def reference_forward(x, p):
    """Pure-JAX reference (unfused) for correctness checking."""
    h = jnp.maximum(x @ p["w1"] + p["b1"], 0.0)
    h = jnp.maximum(h @ p["w2"] + p["b2"], 0.0)
    v = jnp.maximum(h @ p["wv1"] + p["bv1"], 0.0) @ p["wv2"] + p["bv2"]
    a = jnp.maximum(h @ p["wa1"] + p["ba1"], 0.0) @ p["wa2"] + p["ba2"]
    return v + a - jnp.mean(a, axis=1, keepdims=True)


if __name__ == "__main__":
    key = jax.random.PRNGKey(0)
    k_param, k_x, k_xb, k_xc = jax.random.split(key, 4)

    state_size, action_size = 8, 4
    params = make_params(k_param, state_size, action_size, hidden_units=(64, 64))
    fused = fuse_head_params(params, action_size)    # done once, outside the kernel

    # Small-shape check (single grid step).
    x = jax.random.normal(k_x, (2, state_size), jnp.float32)
    q = jax.block_until_ready(dueling_dqn_forward(x, fused))
    q_ref = reference_forward(x, params)
    assert q.shape == (2, action_size)
    assert jnp.allclose(q, q_ref, atol=1e-5, rtol=1e-5), "mismatch vs JAX reference (small)"

    # Exercise the batch grid (multiple pipelined tiles, weights stay resident).
    xb = jax.random.normal(k_xb, (256, state_size), jnp.float32)
    qb = jax.block_until_ready(dueling_dqn_forward(xb, fused, block_batch=128))
    qb_ref = reference_forward(xb, params)
    assert qb.shape == (256, action_size)
    assert jnp.allclose(qb, qb_ref, atol=1e-4, rtol=1e-4), "mismatch vs JAX reference (batched)"

    # Exercise the default tile picker and a remainder (partial) tile.
    xc = jax.random.normal(k_xc, (200, state_size), jnp.float32)
    qc = jax.block_until_ready(dueling_dqn_forward(xc, fused))
    qc_ref = reference_forward(xc, params)
    assert qc.shape == (200, action_size)
    assert jnp.allclose(qc, qc_ref, atol=1e-4, rtol=1e-4), "mismatch vs JAX reference (remainder)"

    print("KERNEL_OK")
</pallas_src>

<mosaic_0001>
module attributes {stable_mosaic.version = 11 : i64} {
  func.func @_dueling_dqn_kernel(%arg0: i32, %arg1: memref<2x8xf32, #tpu.memory_space<vmem>>, %arg2: memref<8x64xf32, #tpu.memory_space<vmem>>, %arg3: memref<1x64xf32, #tpu.memory_space<vmem>>, %arg4: memref<64x64xf32, #tpu.memory_space<vmem>>, %arg5: memref<1x64xf32, #tpu.memory_space<vmem>>, %arg6: memref<64x64xf32, #tpu.memory_space<vmem>>, %arg7: memref<1x64xf32, #tpu.memory_space<vmem>>, %arg8: memref<64x128xf32, #tpu.memory_space<vmem>>, %arg9: memref<1x4xf32, #tpu.memory_space<vmem>>, %arg10: memref<2x4xf32, #tpu.memory_space<vmem>>) attributes {dimension_semantics = [#tpu.dimension_semantics<parallel>], iteration_bounds = array<i64: 1>, scalar_prefetch = 0 : i64, scratch_operands = 0 : i64, tpu.core_type = #tpu.core_type<tc>, window_params = [{transform_indices = @transform_0, window_bounds = array<i64: 2, 8>}, {pipeline_mode = #tpu.pipeline_mode<synchronous>, transform_indices = @transform_1, window_bounds = array<i64: 8, 64>}, {pipeline_mode = #tpu.pipeline_mode<synchronous>, transform_indices = @transform_2, window_bounds = array<i64: 1, 64>}, {pipeline_mode = #tpu.pipeline_mode<synchronous>, transform_indices = @transform_3, window_bounds = array<i64: 64, 64>}, {pipeline_mode = #tpu.pipeline_mode<synchronous>, transform_indices = @transform_4, window_bounds = array<i64: 1, 64>}, {pipeline_mode = #tpu.pipeline_mode<synchronous>, transform_indices = @transform_5, window_bounds = array<i64: 64, 64>}, {pipeline_mode = #tpu.pipeline_mode<synchronous>, transform_indices = @transform_6, window_bounds = array<i64: 1, 64>}, {pipeline_mode = #tpu.pipeline_mode<synchronous>, transform_indices = @transform_7, window_bounds = array<i64: 64, 128>}, {pipeline_mode = #tpu.pipeline_mode<synchronous>, transform_indices = @transform_8, window_bounds = array<i64: 1, 4>}, {transform_indices = @transform_9, window_bounds = array<i64: 2, 4>}]} {
    %c0 = arith.constant 0 : index
    %c0_0 = arith.constant 0 : index
    %0 = vector.load %arg1[%c0, %c0_0] : memref<2x8xf32, #tpu.memory_space<vmem>>, vector<2x8xf32>
    %c0_1 = arith.constant 0 : index
    %c0_2 = arith.constant 0 : index
    %1 = vector.load %arg2[%c0_1, %c0_2] : memref<8x64xf32, #tpu.memory_space<vmem>>, vector<8x64xf32>
    %cst = arith.constant dense<0.000000e+00> : vector<2x64xf32>
    %2 = tpu.matmul %0, %1, %cst {dimension_numbers = #tpu.dot_dimension_numbers<[1], [0], [0], [1], [0, 0, 1, 1], [], []>} : vector<2x8xf32>, vector<8x64xf32>, vector<2x64xf32> -> vector<2x64xf32>
    %c0_3 = arith.constant 0 : index
    %c0_4 = arith.constant 0 : index
    %3 = vector.load %arg3[%c0_3, %c0_4] : memref<1x64xf32, #tpu.memory_space<vmem>>, vector<1x64xf32>
    %4 = vector.broadcast %3 : vector<1x64xf32> to vector<2x64xf32>
    %5 = arith.addf %2, %4 : vector<2x64xf32>
    %cst_5 = arith.constant 0.000000e+00 : f32
    %6 = vector.broadcast %cst_5 : f32 to vector<2x64xf32>
    %7 = arith.maximumf %5, %6 : vector<2x64xf32>
    %c0_6 = arith.constant 0 : index
    %c0_7 = arith.constant 0 : index
    %8 = vector.load %arg4[%c0_6, %c0_7] : memref<64x64xf32, #tpu.memory_space<vmem>>, vector<64x64xf32>
    %cst_8 = arith.constant dense<0.000000e+00> : vector<2x64xf32>
    %9 = tpu.matmul %7, %8, %cst_8 {dimension_numbers = #tpu.dot_dimension_numbers<[1], [0], [0], [1], [0, 0, 1, 1], [], []>} : vector<2x64xf32>, vector<64x64xf32>, vector<2x64xf32> -> vector<2x64xf32>
    %c0_9 = arith.constant 0 : index
    %c0_10 = arith.constant 0 : index
    %10 = vector.load %arg5[%c0_9, %c0_10] : memref<1x64xf32, #tpu.memory_space<vmem>>, vector<1x64xf32>
    %11 = vector.broadcast %10 : vector<1x64xf32> to vector<2x64xf32>
    %12 = arith.addf %9, %11 : vector<2x64xf32>
    %cst_11 = arith.constant 0.000000e+00 : f32
    %13 = vector.broadcast %cst_11 : f32 to vector<2x64xf32>
    %14 = arith.maximumf %12, %13 : vector<2x64xf32>
    %c0_12 = arith.constant 0 : index
    %c0_13 = arith.constant 0 : index
    %15 = vector.load %arg6[%c0_12, %c0_13] : memref<64x64xf32, #tpu.memory_space<vmem>>, vector<64x64xf32>
    %cst_14 = arith.constant dense<0.000000e+00> : vector<2x64xf32>
    %16 = tpu.matmul %14, %15, %cst_14 {dimension_numbers = #tpu.dot_dimension_numbers<[1], [0], [0], [1], [0, 0, 1, 1], [], []>} : vector<2x64xf32>, vector<64x64xf32>, vector<2x64xf32> -> vector<2x64xf32>
    %c0_15 = arith.constant 0 : index
    %c0_16 = arith.constant 0 : index
    %17 = vector.load %arg7[%c0_15, %c0_16] : memref<1x64xf32, #tpu.memory_space<vmem>>, vector<1x64xf32>
    %18 = vector.broadcast %17 : vector<1x64xf32> to vector<2x64xf32>
    %19 = arith.addf %16, %18 : vector<2x64xf32>
    %cst_17 = arith.constant 0.000000e+00 : f32
    %20 = vector.broadcast %cst_17 : f32 to vector<2x64xf32>
    %21 = arith.maximumf %19, %20 : vector<2x64xf32>
    %c0_18 = arith.constant 0 : index
    %c0_19 = arith.constant 0 : index
    %22 = vector.load %arg8[%c0_18, %c0_19] : memref<64x128xf32, #tpu.memory_space<vmem>>, vector<64x128xf32>
    %cst_20 = arith.constant dense<0.000000e+00> : vector<2x128xf32>
    %23 = tpu.matmul %21, %22, %cst_20 {dimension_numbers = #tpu.dot_dimension_numbers<[1], [0], [0], [1], [0, 0, 1, 1], [], []>} : vector<2x64xf32>, vector<64x128xf32>, vector<2x128xf32> -> vector<2x128xf32>
    %24 = vector.extract_strided_slice %23 {offsets = [0, 0], sizes = [2, 4], strides = [1, 1]} : vector<2x128xf32> to vector<2x4xf32>
    %c0_21 = arith.constant 0 : index
    %c0_22 = arith.constant 0 : index
    %25 = vector.load %arg9[%c0_21, %c0_22] : memref<1x4xf32, #tpu.memory_space<vmem>>, vector<1x4xf32>
    %26 = vector.broadcast %25 : vector<1x4xf32> to vector<2x4xf32>
    %27 = arith.addf %24, %26 : vector<2x4xf32>
    %c0_23 = arith.constant 0 : index
    %c0_24 = arith.constant 0 : index
    %28 = vector.load %arg10[%c0_23, %c0_24] : memref<2x4xf32, #tpu.memory_space<vmem>>, vector<2x4xf32>
    tpu.vector_store %arg10[%c0_23, %c0_24], %27 {strides = array<i32>} : memref<2x4xf32, #tpu.memory_space<vmem>>, vector<2x4xf32>,
    return
  }
  func.func @transform_0(%arg0: i32) -> (i32, i32) {
    %c0_i32 = arith.constant 0 : i32
    %c0_i32_0 = arith.constant 0 : i32
    return %arg0, %c0_i32 : i32, i32
  }
  func.func @transform_1(%arg0: i32) -> (i32, i32) {
    %c0_i32 = arith.constant 0 : i32
    %c0_i32_0 = arith.constant 0 : i32
    %c0_i32_1 = arith.constant 0 : i32
    return %c0_i32, %c0_i32_0 : i32, i32
  }
  func.func @transform_2(%arg0: i32) -> (i32, i32) {
    %c0_i32 = arith.constant 0 : i32
    %c0_i32_0 = arith.constant 0 : i32
    %c0_i32_1 = arith.constant 0 : i32
    return %c0_i32, %c0_i32_0 : i32, i32
  }
  func.func @transform_3(%arg0: i32) -> (i32, i32) {
    %c0_i32 = arith.constant 0 : i32
    %c0_i32_0 = arith.constant 0 : i32
    %c0_i32_1 = arith.constant 0 : i32
    return %c0_i32, %c0_i32_0 : i32, i32
  }
  func.func @transform_4(%arg0: i32) -> (i32, i32) {
    %c0_i32 = arith.constant 0 : i32
    %c0_i32_0 = arith.constant 0 : i32
    %c0_i32_1 = arith.constant 0 : i32
    return %c0_i32, %c0_i32_0 : i32, i32
  }
  func.func @transform_5(%arg0: i32) -> (i32, i32) {
    %c0_i32 = arith.constant 0 : i32
    %c0_i32_0 = arith.constant 0 : i32
    %c0_i32_1 = arith.constant 0 : i32
    return %c0_i32, %c0_i32_0 : i32, i32
  }
  func.func @transform_6(%arg0: i32) -> (i32, i32) {
    %c0_i32 = arith.constant 0 : i32
    %c0_i32_0 = arith.constant 0 : i32
    %c0_i32_1 = arith.constant 0 : i32
    return %c0_i32, %c0_i32_0 : i32, i32
  }
  func.func @transform_7(%arg0: i32) -> (i32, i32) {
    %c0_i32 = arith.constant 0 : i32
    %c0_i32_0 = arith.constant 0 : i32
    %c0_i32_1 = arith.constant 0 : i32
    return %c0_i32, %c0_i32_0 : i32, i32
  }
  func.func @transform_8(%arg0: i32) -> (i32, i32) {
    %c0_i32 = arith.constant 0 : i32
    %c0_i32_0 = arith.constant 0 : i32
    %c0_i32_1 = arith.constant 0 : i32
    return %c0_i32, %c0_i32_0 : i32, i32
  }
  func.func @transform_9(%arg0: i32) -> (i32, i32) {
    %c0_i32 = arith.constant 0 : i32
    %c0_i32_0 = arith.constant 0 : i32
    return %arg0, %c0_i32 : i32, i32
  }
}

</mosaic_0001>

<llo_original>
// kernel: tpu_custom_call.1
$region0: #{tpu_custom_call.1}
  #allocation0 [shape = 'u32[]', space=smem, size = 0x4, offset = 0x4, fixed_abs, tag = 'smem constant byte address 0x4 - core index']
  #allocation1 [shape = 'u32[72,128]{1,0:T(1,128)}', space=vmem, size = 0x9000, scoped, tag = 'internal scratch']
  %s0 = inlined_call_operand.hbm [shape: f32[2,8], index: 0, kind: input, shape index: {}]
  %s1 = inlined_call_operand.hbm [shape: f32[8,64], index: 1, kind: input, shape index: {}]
  %s2 = inlined_call_operand.vmem [shape: f32[1,64], index: 2, kind: input, shape index: {}]
  %s3 = inlined_call_operand.hbm [shape: f32[64,64], index: 3, kind: input, shape index: {}]
  %s4 = inlined_call_operand.vmem [shape: f32[1,64], index: 4, kind: input, shape index: {}]
  %s5 = inlined_call_operand.hbm [shape: f32[64,64], index: 5, kind: input, shape index: {}]
  %s6 = inlined_call_operand.vmem [shape: f32[1,64], index: 6, kind: input, shape index: {}]
  %s7 = inlined_call_operand.hbm [shape: f32[64,128], index: 7, kind: input, shape index: {}]
  %s8 = inlined_call_operand.vmem [shape: f32[1,4], index: 8, kind: input, shape index: {}]
  %s9 = inlined_call_operand.hbm [shape: f32[2,4], index: 9, kind: output, shape index: {}]
  %s10 = sld [smem:[#allocation0]]
  $region66: #{tpu_custom_call.1} parent=0
    _
  %s12 = ssub.s32 1, %s10
  %s13 = scalar_select 0, %s12, %s10
  $region1: #{tpu_custom_call.1} parent=0
    #allocation2 [shape = 'u8[1024]{0}', space=vmem, size = 0x400, scoped, tag = 'input window, operand 0, single buffered']
    #allocation3 [shape = 's32[1]{0}', space=sflag, size = 0x4, scoped, tag = 'scoped memory for tpu_custom_call.1']
    #allocation4 [shape = 's32[1]{0}', space=sflag, size = 0x4, scoped, tag = 'scoped memory for tpu_custom_call.1']
    #allocation5 [shape = 'u8[4096]{0}', space=vmem, size = 0x1000, scoped, tag = 'input window, operand 1, single buffered']
    #allocation6 [shape = 's32[1]{0}', space=sflag, size = 0x4, scoped, tag = 'scoped memory for tpu_custom_call.1']
    #allocation7 [shape = 'u8[32768]{0}', space=vmem, size = 0x8000, scoped, tag = 'input window, operand 3, single buffered']
    #allocation8 [shape = 'u8[32768]{0}', space=vmem, size = 0x8000, scoped, tag = 'input window, operand 5, single buffered']
    #allocation9 [shape = 's32[1]{0}', space=sflag, size = 0x4, scoped, tag = 'scoped memory for tpu_custom_call.1']
    #allocation10 [shape = 'u8[32768]{0}', space=vmem, size = 0x8000, scoped, tag = 'input window, operand 7, single buffered']
    #allocation11 [shape = 'u8[1024]{0}', space=vmem, size = 0x400, scoped, tag = 'output window, operand 0, single buffered']
    %14 = vsyncpa [#allocation3], 0
    %15 = vsyncpa [#allocation6], 0
    %16 = vsyncpa [#allocation9], 0
    %17 = vsyncpa [#allocation4], 0
    // Predicated region
    $region2: #{tpu_custom_call.1} parent=1 // pred_check
      _
    $region3: #{tpu_custom_call.1} parent=1 // pred_check_branch
      %19 = sbr.rel (0) target = $region5
    $region4: #{tpu_custom_call.1} parent=1 // pred_region
      %21 = vsyncadd [#allocation3], 0
      %s23 = sshll.u32 %s0, 4
      %s24 = int_to_ptr.hbm [resolvable:$true] %s23
      %s25 = sshll.u32 [#allocation2], 4
      %s26 = int_to_ptr.vmem [resolvable:$true] %s25
      %28 = dma.hbm_to_vmem [thread:$0]  %s24, 32, %s26, [#allocation3]
    $region5: #{tpu_custom_call.1} parent=1 // pred_fallthru
      _
    // Predicated region
    $region6: #{tpu_custom_call.1} parent=1 // pred_check
      _
    $region7: #{tpu_custom_call.1} parent=1 // pred_check_branch
      %30 = sbr.rel (0) target = $region9
    $region8: #{tpu_custom_call.1} parent=1 // pred_region
      %32 = vsyncadd [#allocation6], 0
      %s34 = sshll.u32 %s1, 4
      %s35 = int_to_ptr.hbm [resolvable:$true] %s34
      %s36 = sshll.u32 [#allocation5], 4
      %s37 = int_to_ptr.vmem [resolvable:$true] %s36
      %39 = dma.hbm_to_vmem [thread:$0]  %s35, 128, %s37, [#allocation6]
    $region9: #{tpu_custom_call.1} parent=1 // pred_fallthru
      _
    // Predicated region
    $region10: #{tpu_custom_call.1} parent=1 // pred_check
      _
    $region11: #{tpu_custom_call.1} parent=1 // pred_check_branch
      %41 = sbr.rel (0) target = $region13
    $region12: #{tpu_custom_call.1} parent=1 // pred_region
      _
    $region13: #{tpu_custom_call.1} parent=1 // pred_fallthru
      _
    // Predicated region
    $region14: #{tpu_custom_call.1} parent=1 // pred_check
      _
    $region15: #{tpu_custom_call.1} parent=1 // pred_check_branch
      %43 = sbr.rel (0) target = $region17
    $region16: #{tpu_custom_call.1} parent=1 // pred_region
      %45 = vsyncadd [#allocation6], 0
      %s46 = sshll.u32 %s3, 4
      %s47 = int_to_ptr.hbm [resolvable:$true] %s46
      %s48 = sshll.u32 [#allocation7], 4
      %s49 = int_to_ptr.vmem [resolvable:$true] %s48
      %54 = dma.hbm_to_vmem [thread:$0]  %s47, 1024, %s49, [#allocation6], 128, 128, 8
    $region17: #{tpu_custom_call.1} parent=1 // pred_fallthru
      _
    // Predicated region
    $region18: #{tpu_custom_call.1} parent=1 // pred_check
      _
    $region19: #{tpu_custom_call.1} parent=1 // pred_check_branch
      %56 = sbr.rel (0) target = $region21
    $region20: #{tpu_custom_call.1} parent=1 // pred_region
      _
    $region21: #{tpu_custom_call.1} parent=1 // pred_fallthru
      _
    // Predicated region
    $region22: #{tpu_custom_call.1} parent=1 // pred_check
      _
    $region23: #{tpu_custom_call.1} parent=1 // pred_check_branch
      %58 = sbr.rel (0) target = $region25
    $region24: #{tpu_custom_call.1} parent=1 // pred_region
      %60 = vsyncadd [#allocation9], 0
      %s61 = sshll.u32 %s5, 4
      %s62 = int_to_ptr.hbm [resolvable:$true] %s61
      %s63 = sshll.u32 [#allocation8], 4
      %s64 = int_to_ptr.vmem [resolvable:$true] %s63
      %69 = dma.hbm_to_vmem [thread:$0]  %s62, 1024, %s64, [#allocation9], 128, 128, 8
    $region25: #{tpu_custom_call.1} parent=1 // pred_fallthru
      _
    // Predicated region
    $region26: #{tpu_custom_call.1} parent=1 // pred_check
      _
    $region27: #{tpu_custom_call.1} parent=1 // pred_check_branch
      %71 = sbr.rel (0) target = $region29
    $region28: #{tpu_custom_call.1} parent=1 // pred_region
      _
    $region29: #{tpu_custom_call.1} parent=1 // pred_fallthru
      _
    // Predicated region
    $region30: #{tpu_custom_call.1} parent=1 // pred_check
      _
    $region31: #{tpu_custom_call.1} parent=1 // pred_check_branch
      %73 = sbr.rel (0) target = $region33
    $region32: #{tpu_custom_call.1} parent=1 // pred_region
      %75 = vsyncadd [#allocation9], 0
      %s76 = sshll.u32 %s7, 4
      %s77 = int_to_ptr.hbm [resolvable:$true] %s76
      %s78 = sshll.u32 [#allocation10], 4
      %s79 = int_to_ptr.vmem [resolvable:$true] %s78
      %84 = dma.hbm_to_vmem [thread:$0]  %s77, 1024, %s79, [#allocation9], 128, 128, 8
    $region33: #{tpu_custom_call.1} parent=1 // pred_fallthru
      _
    // Predicated region
    $region34: #{tpu_custom_call.1} parent=1 // pred_check
      _
    $region35: #{tpu_custom_call.1} parent=1 // pred_check_branch
      %86 = sbr.rel (0) target = $region37
    $region36: #{tpu_custom_call.1} parent=1 // pred_region
      _
    $region37: #{tpu_custom_call.1} parent=1 // pred_fallthru
      _
    // Predicated region
    $region38: #{tpu_custom_call.1} parent=1 // pred_check
      _
    $region39: #{tpu_custom_call.1} parent=1 // pred_check_branch
      %88 = sbr.rel (0) target = $region41
    $region40: #{tpu_custom_call.1} parent=1 // pred_region
      %90 = dma.done [#allocation3], 32
    $region41: #{tpu_custom_call.1} parent=1 // pred_fallthru
      _
    // Predicated region
    $region42: #{tpu_custom_call.1} parent=1 // pred_check
      _
    $region43: #{tpu_custom_call.1} parent=1 // pred_check_branch
      %92 = sbr.rel (0) target = $region45
    $region44: #{tpu_custom_call.1} parent=1 // pred_region
      %94 = dma.done [#allocation6], 128
    $region45: #{tpu_custom_call.1} parent=1 // pred_fallthru
      _
    // Predicated region
    $region46: #{tpu_custom_call.1} parent=1 // pred_check
      _
    $region47: #{tpu_custom_call.1} parent=1 // pred_check_branch
      %96 = sbr.rel (0) target = $region49
    $region48: #{tpu_custom_call.1} parent=1 // pred_region
      %98 = dma.done [#allocation6], 1024
    $region49: #{tpu_custom_call.1} parent=1 // pred_fallthru
      _
    // Predicated region
    $region50: #{tpu_custom_call.1} parent=1 // pred_check
      _
    $region51: #{tpu_custom_call.1} parent=1 // pred_check_branch
      %100 = sbr.rel (0) target = $region53
    $region52: #{tpu_custom_call.1} parent=1 // pred_region
      %102 = dma.done [#allocation9], 1024
    $region53: #{tpu_custom_call.1} parent=1 // pred_fallthru
      _
    // Predicated region
    $region54: #{tpu_custom_call.1} parent=1 // pred_check
      _
    $region55: #{tpu_custom_call.1} parent=1 // pred_check_branch
      %104 = sbr.rel (0) target = $region57
    $region56: #{tpu_custom_call.1} parent=1 // pred_region
      %106 = dma.done [#allocation9], 1024
    $region57: #{tpu_custom_call.1} parent=1 // pred_fallthru
      _
    %v107 = vld [vmem:[#allocation2] sm:$0x3]
    %v108 = vld [vmem:[#allocation5] sm:$0xff]
    %v109 = vld [vmem:[%s2] sm:$0x1]
    %v111 = vperm.slane %v109, 0
    %vm113 = vcmask 64512
    %v115 = vsel %vm113, %v107, 0
    %117 = vmatpush.msra.mxu0 0.0
    %118 = vmatpush.msra.mxu0 0.0
    %119 = vmatpush.msra.mxu0 0.0
    %120 = vmatpush.msra.mxu0 0.0
    %121 = vmatpush.msra.mxu0 0.0
    %122 = vmatpush.msra.mxu0 0.0
    %123 = vmatpush.msra.mxu0 0.0
    %124 = vmatpush.msra.mxu0 0.0
    %125 = vmatpush.msra.mxu0 0.0
    %126 = vmatpush.msra.mxu0 0.0
    %127 = vmatpush.msra.mxu0 0.0
    %128 = vmatpush.msra.mxu0 0.0
    %129 = vmatpush.msra.mxu0 0.0
    %130 = vmatpush.msra.mxu0 0.0
    %131 = vmatpush.msra.mxu0 0.0
    %132 = vmatpush.msra.mxu0 %v108
    %133 = vmatmul.f32.gmra.mxu0 %v115
    %v134 = vpop.f32.mrf.mxu0
    %v135 = vadd.f32 %v111, %v134
    %136 = vdwg.mxu0
    %v137 = vmax.f32 %v135, 0.0
    %v138 = vld [vmem:[#allocation7] sm:$0xff]
    %v139 = vld [vmem:[#allocation7 + $0x8] sm:$0xff]
    %v140 = vld [vmem:[#allocation7 + $0x10] sm:$0xff]
    %v141 = vld [vmem:[#allocation7 + $0x18] sm:$0xff]
    %v142 = vld [vmem:[#allocation7 + $0x20] sm:$0xff]
    %v143 = vld [vmem:[#allocation7 + $0x28] sm:$0xff]
    %v144 = vld [vmem:[#allocation7 + $0x30] sm:$0xff]
    %v145 = vld [vmem:[#allocation7 + $0x38] sm:$0xff]
    %v146 = vld [vmem:[%s4] sm:$0x1]
    %v148 = vperm.slane %v146, 0
    %vm150 = vcmask 523264
    %v152 = vsel %vm150, %v137, 0
    %154 = vmatpush.msra.mxu0 0.0
    %155 = vmatpush.msra.mxu0 0.0
    %156 = vmatpush.msra.mxu0 0.0
    %157 = vmatpush.msra.mxu0 0.0
    %158 = vmatpush.msra.mxu0 0.0
    %159 = vmatpush.msra.mxu0 0.0
    %160 = vmatpush.msra.mxu0 0.0
    %161 = vmatpush.msra.mxu0 0.0
    %162 = vmatpush.msra.mxu0 %v145
    %163 = vmatpush.msra.mxu0 %v144
    %164 = vmatpush.msra.mxu0 %v143
    %165 = vmatpush.msra.mxu0 %v142
    %166 = vmatpush.msra.mxu0 %v141
    %167 = vmatpush.msra.mxu0 %v140
    %168 = vmatpush.msra.mxu0 %v139
    %169 = vmatpush.msra.mxu0 %v138
    %170 = vmatmul.f32.gmra.mxu0 %v152
    %v171 = vpop.f32.mrf.mxu0
    %v172 = vadd.f32 %v148, %v171
    %173 = vdwg.mxu0
    %v174 = vmax.f32 %v172, 0.0
    %v175 = vld [vmem:[#allocation8] sm:$0xff]
    %v176 = vld [vmem:[#allocation8 + $0x8] sm:$0xff]
    %v177 = vld [vmem:[#allocation8 + $0x10] sm:$0xff]
    %v178 = vld [vmem:[#allocation8 + $0x18] sm:$0xff]
    %v179 = vld [vmem:[#allocation8 + $0x20] sm:$0xff]
    %v180 = vld [vmem:[#allocation8 + $0x28] sm:$0xff]
    %v181 = vld [vmem:[#allocation8 + $0x30] sm:$0xff]
    %v182 = vld [vmem:[#allocation8 + $0x38] sm:$0xff]
    %v183 = vld [vmem:[%s6] sm:$0x1]
    %v185 = vperm.slane %v183, 0
    %v188 = vsel %vm150, %v174, 0
    %190 = vmatpush.msra.mxu0 0.0
    %191 = vmatpush.msra.mxu0 0.0
    %192 = vmatpush.msra.mxu0 0.0
    %193 = vmatpush.msra.mxu0 0.0
    %194 = vmatpush.msra.mxu0 0.0
    %195 = vmatpush.msra.mxu0 0.0
    %196 = vmatpush.msra.mxu0 0.0
    %197 = vmatpush.msra.mxu0 0.0
    %198 = vmatpush.msra.mxu0 %v182
    %199 = vmatpush.msra.mxu0 %v181
    %200 = vmatpush.msra.mxu0 %v180
    %201 = vmatpush.msra.mxu0 %v179
    %202 = vmatpush.msra.mxu0 %v178
    %203 = vmatpush.msra.mxu0 %v177
    %204 = vmatpush.msra.mxu0 %v176
    %205 = vmatpush.msra.mxu0 %v175
    %206 = vmatmul.f32.gmra.mxu0 %v188
    %v207 = vpop.f32.mrf.mxu0
    %v208 = vadd.f32 %v185, %v207
    %209 = vdwg.mxu0
    %v210 = vmax.f32 %v208, 0.0
    %v211 = vld [vmem:[#allocation10] sm:$0xff]
    %v212 = vld [vmem:[#allocation10 + $0x8] sm:$0xff]
    %v213 = vld [vmem:[#allocation10 + $0x10] sm:$0xff]
    %v214 = vld [vmem:[#allocation10 + $0x18] sm:$0xff]
    %v215 = vld [vmem:[#allocation10 + $0x20] sm:$0xff]
    %v216 = vld [vmem:[#allocation10 + $0x28] sm:$0xff]
    %v217 = vld [vmem:[#allocation10 + $0x30] sm:$0xff]
    %v218 = vld [vmem:[#allocation10 + $0x38] sm:$0xff]
    %v220 = vsel %vm150, %v210, 0
    %222 = vmatpush.msra.mxu0 0.0
    %223 = vmatpush.msra.mxu0 0.0
    %224 = vmatpush.msra.mxu0 0.0
    %225 = vmatpush.msra.mxu0 0.0
    %226 = vmatpush.msra.mxu0 0.0
    %227 = vmatpush.msra.mxu0 0.0
    %228 = vmatpush.msra.mxu0 0.0
    %229 = vmatpush.msra.mxu0 0.0
    %230 = vmatpush.msra.mxu0 %v218
    %231 = vmatpush.msra.mxu0 %v217
    %232 = vmatpush.msra.mxu0 %v216
    %233 = vmatpush.msra.mxu0 %v215
    %234 = vmatpush.msra.mxu0 %v214
    %235 = vmatpush.msra.mxu0 %v213
    %236 = vmatpush.msra.mxu0 %v212
    %237 = vmatpush.msra.mxu0 %v211
    %238 = vmatmul.f32.gmra.mxu0 %v220
    %v239 = vpop.f32.mrf.mxu0
    %v240 = vadd.f32 0.0, %v239
    %241 = vdwg.mxu0
    %v242 = vld [vmem:[%s8] sm:$0x1]
    %v244 = vperm.slane %v242, 0
    %v246 = vadd.f32 %v240, %v244
    %vm247 = vcmask 25600
    %248 = vst.msk [vmem:[#allocation11] sm:$0x3] %vm247, %v246
    // Predicated region
    $region58: #{tpu_custom_call.1} parent=1 // pred_check
      _
    $region59: #{tpu_custom_call.1} parent=1 // pred_check_branch
      %250 = sbr.rel (0) target = $region61
    $region60: #{tpu_custom_call.1} parent=1 // pred_region
      %252 = vsyncadd [#allocation4], 0
      %s254 = sshll.u32 [#allocation11], 4
      %s255 = int_to_ptr.vmem [resolvable:$true] %s254
      %s256 = sshll.u32 %s9, 4
      %s257 = int_to_ptr.hbm [resolvable:$true] %s256
      %259 = dma.vmem_to_hbm [thread:$0]  %s255, 32, %s257, [#allocation4]
    $region61: #{tpu_custom_call.1} parent=1 // pred_fallthru
      _
    // Predicated region
    $region62: #{tpu_custom_call.1} parent=1 // pred_check
      _
    $region63: #{tpu_custom_call.1} parent=1 // pred_check_branch
      %261 = sbr.rel (0) target = $region65
    $region64: #{tpu_custom_call.1} parent=1 // pred_region
      %263 = dma.done [#allocation4], 32
    $region65: #{tpu_custom_call.1} parent=1 // pred_fallthru
      _
    %264 = vsyncpa [#allocation3], 1
    %265 = vsyncpa [#allocation6], 1
    %266 = vsyncpa [#allocation9], 1
    %267 = vsyncpa [#allocation4], 1

</llo_original>
